<compile_context>
chip_gen: v6e
topology: v6e:2x2x1
jax: 0.10.0
libtpu: 0.0.40
codegen_flags: <defaults>
</compile_context>

<pallas_src>
import jax
import jax.numpy as jnp
from jax.experimental import pallas as pl
from jax.experimental.pallas import tpu as pltpu

_LANES = 128


def _keypoint_loss_kernel(p_ref, out_ref, loss_acc, nz_acc):
    step = pl.program_id(0)

    @pl.when(step == 0)
    def _init():
        loss_acc[...] = jnp.zeros_like(loss_acc)
        nz_acc[...] = jnp.zeros_like(nz_acc)

    px = p_ref[0]      # (tm, 128)
    py = p_ref[1]
    gx = p_ref[2]
    gy = p_ref[3]
    mask = p_ref[4]
    w = p_ref[5]       # 0.125 / sigma^2 / (area + 1e-9); zero in the padded tail

    dx = px - gx
    dy = py - gy
    e = (dx * dx + dy * dy) * w                 # == d / (2*sigma)^2 / (area+eps) / 2
    loss_elems = (1.0 - jnp.exp(-e)) * mask     # padded tail: mask == 0 -> contributes 0
    nz_elems = jnp.where(mask != 0.0, 1.0, 0.0)

    # Per-lane partial sums accumulated across grid steps (stays in the vector domain).
    loss_acc[...] += jnp.sum(loss_elems, axis=0, keepdims=True)
    nz_acc[...] += jnp.sum(nz_elems, axis=0, keepdims=True)

    @pl.when(step == pl.num_programs(0) - 1)
    def _finalize():
        loss_sum = jnp.sum(loss_acc[...])
        nz_sum = jnp.sum(nz_acc[...])
        # (total/(nz+eps)) * (sum/total) == sum/(nz+eps)  (total cancels exactly)
        out_ref[0, 0] = loss_sum / (nz_sum + 1e-9)


def keypoint_loss(pred_kpts, gt_kpts, kpt_mask, area, sigmas, *, max_rows_per_tile=1024):
    """pred_kpts, gt_kpts: (N, K, >=2); kpt_mask: (N, K); area: (N, 1); sigmas: (K,)."""
    N, K = kpt_mask.shape
    f32 = jnp.float32

    px = pred_kpts[..., 0].astype(f32)
    py = pred_kpts[..., 1].astype(f32)
    gx = gt_kpts[..., 0].astype(f32)
    gy = gt_kpts[..., 1].astype(f32)
    mask = kpt_mask.astype(f32)
    area_f = area.reshape(N, 1).astype(f32)
    sig = sigmas.reshape(1, K).astype(f32)

    # Precompute the per-element weight once (no divides on the EUP inside the kernel):
    # e = d / (2*sig)^2 / (area+eps) / 2 == d * (0.125 / sig^2 / (area+eps))
    w = (0.125 / (sig * sig)) / (area_f + 1e-9)          # (N, K)

    # Lane-dense repack: flatten every (N,K) plane, pad to a whole number of
    # (tm, 128) tiles, stack the 6 planes into a single (6, rows_pad, 128) array.
    total = N * K
    rows = -(-total // _LANES)                 # ceil(total / 128)
    rows8 = -(-rows // 8) * 8                  # sublane multiple
    tm = min(max_rows_per_tile, rows8)         # rows per grid step
    rows_pad = -(-rows8 // tm) * tm
    padded_len = rows_pad * _LANES

    def plane(x):
        flat = jnp.pad(x.reshape(-1), (0, padded_len - total))
        return flat.reshape(rows_pad, _LANES)

    packed = jnp.stack(
        [plane(px), plane(py), plane(gx), plane(gy), plane(mask), plane(w)], axis=0
    )                                           # (6, rows_pad, 128)

    grid = (rows_pad // tm,)

    out = pl.pallas_call(
        _keypoint_loss_kernel,
        out_shape=jax.ShapeDtypeStruct((1, 1), jnp.float32),
        grid_spec=pltpu.PrefetchScalarGridSpec(
            num_scalar_prefetch=0,
            grid=grid,
            in_specs=[pl.BlockSpec((6, tm, _LANES), lambda i: (0, i, 0))],
            out_specs=pl.BlockSpec(memory_space=pltpu.MemorySpace.SMEM),
            scratch_shapes=[
                pltpu.VMEM((1, _LANES), jnp.float32),   # running masked-loss sum (per lane)
                pltpu.VMEM((1, _LANES), jnp.float32),   # running nonzero-mask count (per lane)
            ],
        ),
        compiler_params=pltpu.CompilerParams(
            dimension_semantics=("arbitrary",),
        ),
    )(packed)
    return out[0, 0]


def _reference(pred_kpts, gt_kpts, kpt_mask, area, sigmas):
    d = (pred_kpts[..., 0] - gt_kpts[..., 0]) ** 2 + (pred_kpts[..., 1] - gt_kpts[..., 1]) ** 2
    kpt_loss_factor = (jnp.sum(kpt_mask != 0) + jnp.sum(kpt_mask == 0)) / (jnp.sum(kpt_mask != 0) + 1e-9)
    e = d / (2 * sigmas) ** 2 / (area + 1e-9) / 2
    return kpt_loss_factor * jnp.mean((1 - jnp.exp(-e)) * kpt_mask)


if __name__ == "__main__":
    key = jax.random.PRNGKey(0)
    N, K = 8, 17   # 8 instances, 17 COCO keypoints

    k1, k2, k3, k4 = jax.random.split(key, 4)
    pred_kpts = jax.random.uniform(k1, (N, K, 3), dtype=jnp.float32) * 64.0
    gt_kpts = jax.random.uniform(k2, (N, K, 3), dtype=jnp.float32) * 64.0
    kpt_mask = (jax.random.uniform(k3, (N, K)) > 0.3).astype(jnp.float32)
    area = jax.random.uniform(k4, (N, 1), dtype=jnp.float32) * 100.0 + 1.0
    # Deterministic OKS sigmas (uniform, sums to 1).
    sigmas = jnp.full((K,), 1.0 / K, dtype=jnp.float32)

    loss = keypoint_loss(pred_kpts, gt_kpts, kpt_mask, area, sigmas)
    jax.block_until_ready(loss)

    ref = _reference(pred_kpts, gt_kpts, kpt_mask, area, sigmas)
    assert jnp.allclose(loss, ref, rtol=1e-5, atol=1e-6), (loss, ref)

    print("KERNEL_OK")
</pallas_src>

<mosaic_0001>
module attributes {stable_mosaic.version = 11 : i64} {
  func.func @_keypoint_loss_kernel(%arg0: i32, %arg1: memref<6x8x128xf32, #tpu.memory_space<vmem>>, %arg2: memref<1x1xf32, #tpu.memory_space<smem>>, %arg3: memref<1x128xf32, #tpu.memory_space<vmem>>, %arg4: memref<1x128xf32, #tpu.memory_space<vmem>>) attributes {dimension_semantics = [#tpu.dimension_semantics<arbitrary>], iteration_bounds = array<i64: 1>, scalar_prefetch = 0 : i64, scratch_operands = 2 : i64, tpu.core_type = #tpu.core_type<tc>, window_params = [{transform_indices = @transform_0, window_bounds = array<i64: 6, 8, 128>}, {transform_indices = @transform_1, window_bounds = array<i64: 1, 1>}]} {
    %c0_i32 = arith.constant 0 : i32
    %0 = arith.cmpi eq, %arg0, %c0_i32 : i32
    %1 = arith.extui %0 : i1 to i32
    %c0_i32_0 = arith.constant 0 : i32
    %2 = arith.cmpi ne, %1, %c0_i32_0 : i32
    scf.if %2 {
      %cst_29 = arith.constant 0.000000e+00 : f32
      %45 = vector.broadcast %cst_29 : f32 to vector<1x128xf32>
      %c0_30 = arith.constant 0 : index
      %c0_31 = arith.constant 0 : index
      %46 = vector.load %arg3[%c0_30, %c0_31] : memref<1x128xf32, #tpu.memory_space<vmem>>, vector<1x128xf32>
      tpu.vector_store %arg3[%c0_30, %c0_31], %45 {strides = array<i32>} : memref<1x128xf32, #tpu.memory_space<vmem>>, vector<1x128xf32>,
      %cst_32 = arith.constant 0.000000e+00 : f32
      %47 = vector.broadcast %cst_32 : f32 to vector<1x128xf32>
      %c0_33 = arith.constant 0 : index
      %c0_34 = arith.constant 0 : index
      %48 = vector.load %arg4[%c0_33, %c0_34] : memref<1x128xf32, #tpu.memory_space<vmem>>, vector<1x128xf32>
      tpu.vector_store %arg4[%c0_33, %c0_34], %47 {strides = array<i32>} : memref<1x128xf32, #tpu.memory_space<vmem>>, vector<1x128xf32>,
    } else {
    }
    %c0 = arith.constant 0 : index
    %c0_1 = arith.constant 0 : index
    %c0_2 = arith.constant 0 : index
    %3 = vector.load %arg1[%c0, %c0_1, %c0_2] : memref<6x8x128xf32, #tpu.memory_space<vmem>>, vector<1x8x128xf32>
    %4 = vector.shape_cast %3 : vector<1x8x128xf32> to vector<8x128xf32>
    %c1 = arith.constant 1 : index
    %c0_3 = arith.constant 0 : index
    %c0_4 = arith.constant 0 : index
    %5 = vector.load %arg1[%c1, %c0_3, %c0_4] : memref<6x8x128xf32, #tpu.memory_space<vmem>>, vector<1x8x128xf32>
    %6 = vector.shape_cast %5 : vector<1x8x128xf32> to vector<8x128xf32>
    %c2 = arith.constant 2 : index
    %c0_5 = arith.constant 0 : index
    %c0_6 = arith.constant 0 : index
    %7 = vector.load %arg1[%c2, %c0_5, %c0_6] : memref<6x8x128xf32, #tpu.memory_space<vmem>>, vector<1x8x128xf32>
    %8 = vector.shape_cast %7 : vector<1x8x128xf32> to vector<8x128xf32>
    %c3 = arith.constant 3 : index
    %c0_7 = arith.constant 0 : index
    %c0_8 = arith.constant 0 : index
    %9 = vector.load %arg1[%c3, %c0_7, %c0_8] : memref<6x8x128xf32, #tpu.memory_space<vmem>>, vector<1x8x128xf32>
    %10 = vector.shape_cast %9 : vector<1x8x128xf32> to vector<8x128xf32>
    %c4 = arith.constant 4 : index
    %c0_9 = arith.constant 0 : index
    %c0_10 = arith.constant 0 : index
    %11 = vector.load %arg1[%c4, %c0_9, %c0_10] : memref<6x8x128xf32, #tpu.memory_space<vmem>>, vector<1x8x128xf32>
    %12 = vector.shape_cast %11 : vector<1x8x128xf32> to vector<8x128xf32>
    %c5 = arith.constant 5 : index
    %c0_11 = arith.constant 0 : index
    %c0_12 = arith.constant 0 : index
    %13 = vector.load %arg1[%c5, %c0_11, %c0_12] : memref<6x8x128xf32, #tpu.memory_space<vmem>>, vector<1x8x128xf32>
    %14 = vector.shape_cast %13 : vector<1x8x128xf32> to vector<8x128xf32>
    %15 = arith.subf %4, %8 : vector<8x128xf32>
    %16 = arith.subf %6, %10 : vector<8x128xf32>
    %17 = arith.mulf %15, %15 : vector<8x128xf32>
    %18 = arith.mulf %16, %16 : vector<8x128xf32>
    %19 = arith.addf %17, %18 : vector<8x128xf32>
    %20 = arith.mulf %19, %14 : vector<8x128xf32>
    %cst = arith.constant 0.000000e+00 : f32
    %21 = vector.broadcast %cst : f32 to vector<8x128xf32>
    %22 = arith.subf %21, %20 : vector<8x128xf32>
    %23 = math.exp %22 : vector<8x128xf32>
    %cst_13 = arith.constant 1.000000e+00 : f32
    %24 = vector.broadcast %cst_13 : f32 to vector<8x128xf32>
    %25 = arith.subf %24, %23 : vector<8x128xf32>
    %26 = arith.mulf %25, %12 : vector<8x128xf32>
    %cst_14 = arith.constant 0.000000e+00 : f32
    %27 = vector.broadcast %cst_14 : f32 to vector<8x128xf32>
    %28 = arith.cmpf one, %12, %27 : vector<8x128xf32>
    %cst_15 = arith.constant 1.000000e+00 : f32
    %cst_16 = arith.constant 0.000000e+00 : f32
    %29 = vector.broadcast %cst_15 : f32 to vector<8x128xf32>
    %30 = vector.broadcast %cst_16 : f32 to vector<8x128xf32>
    %31 = arith.select %28, %29, %30 : vector<8x128xi1>, vector<8x128xf32>
    %c0_17 = arith.constant 0 : index
    %c0_18 = arith.constant 0 : index
    %32 = vector.load %arg3[%c0_17, %c0_18] : memref<1x128xf32, #tpu.memory_space<vmem>>, vector<1x128xf32>
    %cst_19 = arith.constant dense<0.000000e+00> : vector<128xf32>
    %33 = vector.multi_reduction <add>, %26, %cst_19 [0] : vector<8x128xf32> to vector<128xf32>
    %34 = vector.shape_cast %33 : vector<128xf32> to vector<1x128xf32>
    %35 = arith.addf %32, %34 : vector<1x128xf32>
    %c0_20 = arith.constant 0 : index
    %c0_21 = arith.constant 0 : index
    %36 = vector.load %arg3[%c0_20, %c0_21] : memref<1x128xf32, #tpu.memory_space<vmem>>, vector<1x128xf32>
    tpu.vector_store %arg3[%c0_20, %c0_21], %35 {strides = array<i32>} : memref<1x128xf32, #tpu.memory_space<vmem>>, vector<1x128xf32>,
    %c0_22 = arith.constant 0 : index
    %c0_23 = arith.constant 0 : index
    %37 = vector.load %arg4[%c0_22, %c0_23] : memref<1x128xf32, #tpu.memory_space<vmem>>, vector<1x128xf32>
    %cst_24 = arith.constant dense<0.000000e+00> : vector<128xf32>
    %38 = vector.multi_reduction <add>, %31, %cst_24 [0] : vector<8x128xf32> to vector<128xf32>
    %39 = vector.shape_cast %38 : vector<128xf32> to vector<1x128xf32>
    %40 = arith.addf %37, %39 : vector<1x128xf32>
    %c0_25 = arith.constant 0 : index
    %c0_26 = arith.constant 0 : index
    %41 = vector.load %arg4[%c0_25, %c0_26] : memref<1x128xf32, #tpu.memory_space<vmem>>, vector<1x128xf32>
    tpu.vector_store %arg4[%c0_25, %c0_26], %40 {strides = array<i32>} : memref<1x128xf32, #tpu.memory_space<vmem>>, vector<1x128xf32>,
    %c0_i32_27 = arith.constant 0 : i32
    %42 = arith.cmpi eq, %arg0, %c0_i32_27 : i32
    %43 = arith.extui %42 : i1 to i32
    %c0_i32_28 = arith.constant 0 : i32
    %44 = arith.cmpi ne, %43, %c0_i32_28 : i32
    scf.if %44 {
      %c0_29 = arith.constant 0 : index
      %c0_30 = arith.constant 0 : index
      %45 = vector.load %arg3[%c0_29, %c0_30] : memref<1x128xf32, #tpu.memory_space<vmem>>, vector<1x128xf32>
      %46 = vector.shape_cast %45 : vector<1x128xf32> to vector<1x1x128xf32>
      %cst_31 = arith.constant dense<0.000000e+00> : vector<1xf32>
      %47 = vector.multi_reduction <add>, %46, %cst_31 [1, 2] : vector<1x1x128xf32> to vector<1xf32>
      %48 = vector.shape_cast %47 : vector<1xf32> to vector<1x1x1xf32>
      %49 = vector.extract %48[0, 0, 0] : f32 from vector<1x1x1xf32>
      %c0_32 = arith.constant 0 : index
      %c0_33 = arith.constant 0 : index
      %50 = vector.load %arg4[%c0_32, %c0_33] : memref<1x128xf32, #tpu.memory_space<vmem>>, vector<1x128xf32>
      %51 = vector.shape_cast %50 : vector<1x128xf32> to vector<1x1x128xf32>
      %cst_34 = arith.constant dense<0.000000e+00> : vector<1xf32>
      %52 = vector.multi_reduction <add>, %51, %cst_34 [1, 2] : vector<1x1x128xf32> to vector<1xf32>
      %53 = vector.shape_cast %52 : vector<1xf32> to vector<1x1x1xf32>
      %54 = vector.extract %53[0, 0, 0] : f32 from vector<1x1x1xf32>
      %cst_35 = arith.constant 9.99999971E-10 : f32
      %55 = arith.addf %54, %cst_35 : f32
      %56 = arith.divf %49, %55 : f32
      %c0_36 = arith.constant 0 : index
      %c0_37 = arith.constant 0 : index
      %57 = memref.load %arg2[%c0_36, %c0_37] : memref<1x1xf32, #tpu.memory_space<smem>>
      memref.store %56, %arg2[%c0_36, %c0_37] : memref<1x1xf32, #tpu.memory_space<smem>>
    } else {
    }
    return
  }
  func.func @transform_0(%arg0: i32) -> (i32, i32, i32) {
    %c0_i32 = arith.constant 0 : i32
    %c0_i32_0 = arith.constant 0 : i32
    %c0_i32_1 = arith.constant 0 : i32
    return %c0_i32, %arg0, %c0_i32_0 : i32, i32, i32
  }
  func.func @transform_1(%arg0: i32) -> (i32, i32) {
    %c0_i32 = arith.constant 0 : i32
    %c0_i32_0 = arith.constant 0 : i32
    %c0_i32_1 = arith.constant 0 : i32
    return %c0_i32, %c0_i32_0 : i32, i32
  }
}

</mosaic_0001>

<llo_original>
// kernel: tpu_custom_call.1
$region0: #{tpu_custom_call.1}
  #allocation0 [shape = 'u32[]', space=smem, size = 0x4, offset = 0x4, fixed_abs, tag = 'smem constant byte address 0x4 - core index']
  #allocation1 [shape = 'u32[144,128]{1,0:T(1,128)}', space=vmem, size = 0x12000, scoped, tag = 'internal scratch']
  #allocation2 [shape = 'f32[1,128]{1,0:T(1,128)}', space=vmem, size = 0x200, scoped, tag = 'scratch operand']
  #allocation3 [shape = 'f32[1,128]{1,0:T(1,128)}', space=vmem, size = 0x200, scoped, tag = 'scratch operand']
  %s0 = inlined_call_operand.hbm [shape: f32[6,8,128], index: 0, kind: input, shape index: {}]
  %s1 = inlined_call_operand.hbm [shape: f32[1,1], index: 1, kind: output, shape index: {}]
  %s2 = sld [smem:[#allocation0]]
  $region26: #{tpu_custom_call.1} parent=0
    _
  %s4 = ssub.s32 1, %s2
  %s5 = scalar_select 0, %s4, %s2
  $region1: #{tpu_custom_call.1} parent=0
    #allocation4 [shape = 'u8[24576]{0}', space=vmem, size = 0x6000, scoped, tag = 'input window, operand 0, single buffered']
    #allocation5 [shape = 's32[1]{0}', space=sflag, size = 0x4, scoped, tag = 'scoped memory for tpu_custom_call.1']
    #allocation6 [shape = 's32[1]{0}', space=sflag, size = 0x4, scoped, tag = 'scoped memory for tpu_custom_call.1']
    #allocation7 [shape = 'u8[512]{0}', space=smem, size = 0x200, scoped, tag = 'output window, operand 0, single buffered']
    %6 = vsyncpa [#allocation5], 0
    %7 = vsyncpa [#allocation6], 0
    // Predicated region
    $region2: #{tpu_custom_call.1} parent=1 // pred_check
      _
    $region3: #{tpu_custom_call.1} parent=1 // pred_check_branch
      %9 = sbr.rel (0) target = $region5
    $region4: #{tpu_custom_call.1} parent=1 // pred_region
      %s11 = ssub.s32 768, 768
      %12 = vsyncadd [#allocation5], %s11
      %s13 = sshll.u32 [#allocation4], 4
      %s14 = int_to_ptr.vmem [resolvable:$true] %s13
      %19 = dma.hbm_to_vmem [thread:$0]  %s0, 768, %s14, [#allocation5], 128, 128, 8
    $region5: #{tpu_custom_call.1} parent=1 // pred_fallthru
      _
    // Predicated region
    $region6: #{tpu_custom_call.1} parent=1 // pred_check
      _
    $region7: #{tpu_custom_call.1} parent=1 // pred_check_branch
      %21 = sbr.rel (0) target = $region9
    $region8: #{tpu_custom_call.1} parent=1 // pred_region
      %22 = dma.done [#allocation5], 768
    $region9: #{tpu_custom_call.1} parent=1 // pred_fallthru
      _
    %p23 = scmp.eq.s32.totalorder 0, 0
    // Predicated region
    $region10: #{tpu_custom_call.1} parent=1 // pred_check
      %p24 = pneg %p23
    $region11: #{tpu_custom_call.1} parent=1 // pred_check_branch
      %26 = sbr.rel (%p24) target = $region13
    $region12: #{tpu_custom_call.1} parent=1 // pred_region
      %27 = vst [vmem:[#allocation2] sm:$0x1] 0.0
      %28 = vst [vmem:[#allocation3] sm:$0x1] 0.0
    $region13: #{tpu_custom_call.1} parent=1 // pred_fallthru
      _
    %v29 = vld [vmem:[#allocation4] sm:$0xff]
    %s30 = scalar_lea.vmem [#allocation4], 8
    %v31 = vld [vmem:[%s30] sm:$0xff]
    %s32 = scalar_lea.vmem [#allocation4], 16
    %v33 = vld [vmem:[%s32] sm:$0xff]
    %s34 = scalar_lea.vmem [#allocation4], 24
    %v35 = vld [vmem:[%s34] sm:$0xff]
    %s36 = scalar_lea.vmem [#allocation4], 32
    %v37 = vld [vmem:[%s36] sm:$0xff]
    %s38 = scalar_lea.vmem [#allocation4], 40
    %v39 = vld [vmem:[%s38] sm:$0xff]
    %v40 = vsub.f32 %v29, %v33
    %v41 = vsub.f32 %v31, %v35
    %v42 = vmul.f32 %v40, %v40
    %v43 = vmul.f32 %v41, %v41
    %v44 = vadd.f32 %v42, %v43
    %v45 = vmul.f32 %v44, %v39
    %v46 = vsub.f32 0.0, %v45
    %v47 = vmul.f32 %v46, 1.442695
    %v48 = vpow.pop %v47
    %v49 = vsub.f32 1.0, %v48
    %v50 = vmul.f32 %v49, %v37
    %vm51 = vcmp.ne.f32.partialorder %v37, 0.0
    %v52 = vsel %vm51, 1.0, 0.0
    %v53 = vld [vmem:[#allocation2] sm:$0x1]
    %v54 = vrot.slane %v50, 4
    %v55 = vadd.f32 %v50, %v54
    %v56 = vrot.slane %v55, 2
    %v57 = vadd.f32 %v55, %v56
    %v58 = vrot.slane %v57, 1
    %v59 = vadd.f32 %v57, %v58
    %v60 = vadd.f32 %v53, %v59
    %61 = vst [vmem:[#allocation2] sm:$0x1] %v60
    %v62 = vld [vmem:[#allocation3] sm:$0x1]
    %v63 = vrot.slane %v52, 4
    %v64 = vadd.f32 %v52, %v63
    %v65 = vrot.slane %v64, 2
    %v66 = vadd.f32 %v64, %v65
    %v67 = vrot.slane %v66, 1
    %v68 = vadd.f32 %v66, %v67
    %v69 = vadd.f32 %v62, %v68
    %70 = vst [vmem:[#allocation3] sm:$0x1] %v69
    // Predicated region
    $region14: #{tpu_custom_call.1} parent=1 // pred_check
      %p71 = pneg %p23
    $region15: #{tpu_custom_call.1} parent=1 // pred_check_branch
      %73 = sbr.rel (%p71) target = $region17
    $region16: #{tpu_custom_call.1} parent=1 // pred_region
      %v74 = vld [vmem:[#allocation2] sm:$0x1]
      %vm75 = vcmask 1040384
      %v76 = vsel %vm75, %v74, 0.0
      %77 = vadd.xlane.f32.xlu0 %v76
      %v78 = vpop.xlane.xlu0 %77
      %v79 = vrot.slane %v78, 4
      %v80 = vadd.f32 %v78, %v79
      %v81 = vrot.slane %v80, 2
      %v82 = vadd.f32 %v80, %v81
      %v83 = vrot.slane %v82, 1
      %v84 = vadd.f32 %v82, %v83
      %s85 = vtos %v84
      %v86 = vld [vmem:[#allocation3] sm:$0x1]
      %v87 = vsel %vm75, %v86, 0.0
      %88 = vadd.xlane.f32.xlu0 %v87
      %v89 = vpop.xlane.xlu0 %88
      %v90 = vrot.slane %v89, 4
      %v91 = vadd.f32 %v89, %v90
      %v92 = vrot.slane %v91, 2
      %v93 = vadd.f32 %v91, %v92
      %v94 = vrot.slane %v93, 1
      %v95 = vadd.f32 %v93, %v94
      %s96 = vtos %v95
      %s97 = sadd.f32 %s96, 1e-09
      %v98 = vstv %s97
      %v99 = vrcp.pop %v98
      %s100 = vtos %v99
      %s101 = smul.f32 %s85, %s100
      %s102 = scalar_lea.smem [#allocation7], 0
      %103 = sst [smem:[%s102]] %s101
    $region17: #{tpu_custom_call.1} parent=1 // pred_fallthru
      _
    // Predicated region
    $region18: #{tpu_custom_call.1} parent=1 // pred_check
      _
    $region19: #{tpu_custom_call.1} parent=1 // pred_check_branch
      %105 = sbr.rel (0) target = $region21
    $region20: #{tpu_custom_call.1} parent=1 // pred_region
      %s107 = ssub.s32 16, 16
      %108 = vsyncadd [#allocation6], %s107
      %111 = dma.smem_to_hbm [#allocation7], 16, %s1, [#allocation6]
    $region21: #{tpu_custom_call.1} parent=1 // pred_fallthru
      _
    // Predicated region
    $region22: #{tpu_custom_call.1} parent=1 // pred_check
      _
    $region23: #{tpu_custom_call.1} parent=1 // pred_check_branch
      %113 = sbr.rel (0) target = $region25
    $region24: #{tpu_custom_call.1} parent=1 // pred_region
      %114 = dma.done [#allocation6], 16
    $region25: #{tpu_custom_call.1} parent=1 // pred_fallthru
      _
    %115 = sfence
    %116 = vsyncpa [#allocation5], 1
    %117 = vsyncpa [#allocation6], 1

</llo_original>
